<compile_context>
chip_gen: v7x
topology: tpu7x:2x2x1
jax: 0.10.0
libtpu: 0.0.40
codegen_flags: <defaults>
</compile_context>

<pallas_src>
import functools
import math

import jax
import jax.numpy as jnp
from jax import lax
from jax.experimental import pallas as pl
from jax.experimental.pallas import tpu as pltpu


# ----------------------------------------------------------------------------
# helpers
# ----------------------------------------------------------------------------
def _round_up(x, m):
    return ((x + m - 1) // m) * m


def _pad2d(x, rows, cols):
    r, c = x.shape
    if r == rows and c == cols:
        return x
    return jnp.pad(x, ((0, rows - r), (0, cols - c)))


def _pick_tile(n, candidates=(512, 256, 128), prefer_split=True):
    """Largest candidate dividing n; if prefer_split, prefer one leaving >=2 blocks
    (keeps parallel grid axes >=2 so both v7x TensorCores get work)."""
    divs = [c for c in candidates if n % c == 0]
    if not divs:
        return n
    if prefer_split:
        for c in divs:
            if n // c >= 2:
                return c
    return divs[0]


def _pick_divisor_tile(n):
    for c in (512, 256, 128, 64, 32, 16, 8):
        if n % c == 0:
            return c
    return n  # full-dim fallback (still legal: block == full array dim)


def _vmem_limit_bytes():
    # v5e/v6e: 128 MiB physical VMEM, v7x: 64 MiB. Use ~3/4 of capacity (capped),
    # fall back to the conservative 32 MiB if the query is unavailable.
    try:
        cap = int(getattr(pltpu.get_tpu_info(), "vmem_capacity_bytes", 0))
        if cap > 0:
            return min((cap * 3) // 4, 96 * 1024 * 1024)
    except Exception:
        pass
    return 32 * 1024 * 1024


_VMEM_LIMIT = _vmem_limit_bytes()


# ----------------------------------------------------------------------------
# pre-padded / pre-cast linear weights (cached once at module init)
# ----------------------------------------------------------------------------
class PreppedLinear:
    def __init__(self, W, bias=None):
        fi, fo = W.shape
        self.in_dim, self.out_dim = fi, fo
        self.in_pad, self.out_pad = _round_up(fi, 128), _round_up(fo, 128)
        self.Wp = _pad2d(W.astype(jnp.float32), self.in_pad, self.out_pad).astype(jnp.bfloat16)
        if bias is None:
            bias = jnp.zeros((fo,), jnp.float32)
        self.bp = _pad2d(bias.reshape(1, fo).astype(jnp.float32), 1, self.out_pad)


# ----------------------------------------------------------------------------
# fused linear: out = act(X @ W + b), K-tiled, bf16 MXU inputs, f32 accum in o_ref
# ----------------------------------------------------------------------------
def _linear_kernel(x_ref, w_ref, b_ref, o_ref, *, activation):
    partial = jnp.dot(x_ref[...], w_ref[...], preferred_element_type=jnp.float32)

    @pl.when(pl.program_id(2) == 0)
    def _():
        o_ref[...] = partial

    @pl.when(pl.program_id(2) > 0)
    def _():
        o_ref[...] += partial

    @pl.when(pl.program_id(2) == pl.num_programs(2) - 1)
    def _():
        out = o_ref[...] + b_ref[...]
        if activation == "relu":
            out = jnp.maximum(out, 0.0)
        o_ref[...] = out


def linear(x, lin: PreppedLinear, activation=None, keep_padded=False):
    M, K = x.shape
    assert K == lin.in_dim
    Mp, Kp, Np_ = _round_up(M, 128), lin.in_pad, lin.out_pad
    tm = _pick_tile(Mp)
    tn = _pick_tile(Np_)
    tk = _pick_tile(Kp, (1024, 512, 256, 128), prefer_split=False)
    x_p = _pad2d(x, Mp, Kp).astype(jnp.bfloat16)

    out = pl.pallas_call(
        functools.partial(_linear_kernel, activation=activation),
        out_shape=jax.ShapeDtypeStruct((Mp, Np_), jnp.float32),
        grid=(Mp // tm, Np_ // tn, Kp // tk),
        in_specs=[
            pl.BlockSpec((tm, tk), lambda i, j, k: (i, k)),
            pl.BlockSpec((tk, tn), lambda i, j, k: (k, j)),
            pl.BlockSpec((1, tn), lambda i, j, k: (0, j)),
        ],
        out_specs=pl.BlockSpec((tm, tn), lambda i, j, k: (i, j)),
        compiler_params=pltpu.CompilerParams(
            dimension_semantics=("parallel", "parallel", "arbitrary"),
            vmem_limit_bytes=_VMEM_LIMIT),
    )(x_p, lin.Wp, lin.bp)
    if keep_padded:
        return out
    return out[:M, :lin.out_dim]


# ----------------------------------------------------------------------------
# fused 2-layer MLP head: relu(X @ W1 + b1) @ W2 + b2 (both weights VMEM-resident)
# ----------------------------------------------------------------------------
def _mlp2_kernel(x_ref, w1_ref, b1_ref, w2_ref, b2_ref, o_ref):
    t = jnp.dot(x_ref[...], w1_ref[...], preferred_element_type=jnp.float32)
    t = jnp.maximum(t + b1_ref[...], 0.0)
    o = jnp.dot(t.astype(jnp.bfloat16), w2_ref[...], preferred_element_type=jnp.float32)
    o_ref[...] = o + b2_ref[...]


def mlp2(x, lin1: PreppedLinear, lin2: PreppedLinear):
    assert lin1.out_pad == lin2.in_pad
    M = x.shape[0]
    Mp = _round_up(M, 128)
    tm = _pick_tile(Mp)
    x_p = _pad2d(x, Mp, lin1.in_pad).astype(jnp.bfloat16)
    out = pl.pallas_call(
        _mlp2_kernel,
        out_shape=jax.ShapeDtypeStruct((Mp, lin2.out_pad), jnp.float32),
        grid=(Mp // tm,),
        in_specs=[
            pl.BlockSpec((tm, lin1.in_pad), lambda i: (i, 0)),
            pl.BlockSpec((lin1.in_pad, lin1.out_pad), lambda i: (0, 0)),
            pl.BlockSpec((1, lin1.out_pad), lambda i: (0, 0)),
            pl.BlockSpec((lin2.in_pad, lin2.out_pad), lambda i: (0, 0)),
            pl.BlockSpec((1, lin2.out_pad), lambda i: (0, 0)),
        ],
        out_specs=pl.BlockSpec((tm, lin2.out_pad), lambda i: (i, 0)),
        compiler_params=pltpu.CompilerParams(
            dimension_semantics=("parallel",),
            vmem_limit_bytes=_VMEM_LIMIT),
    )(x_p, lin1.Wp, lin1.bp, lin2.Wp, lin2.bp)
    return out[:M, :lin2.out_dim]


# ----------------------------------------------------------------------------
# streamed adjacency matmul: act(A_pre @ XW + b), A read exactly once
# ----------------------------------------------------------------------------
def _adj_matmul_kernel(a_ref, xw_ref, b_ref, o_ref, *, activation):
    partial = jnp.dot(a_ref[...], xw_ref[...], preferred_element_type=jnp.float32)

    @pl.when(pl.program_id(1) == 0)
    def _():
        o_ref[...] = partial

    @pl.when(pl.program_id(1) > 0)
    def _():
        o_ref[...] += partial

    @pl.when(pl.program_id(1) == pl.num_programs(1) - 1)
    def _():
        out = o_ref[...] + b_ref[...]
        if activation == "relu":
            out = jnp.maximum(out, 0.0)
        o_ref[...] = out


def adj_matmul(A_pre, xw_pad, bias_pad, activation=None):
    """A_pre: [Np, Np] bf16 (pre-padded / pre-cast). xw_pad: [Np, Hp]. bias: [1, Hp]."""
    Np_ = A_pre.shape[0]
    Hp = xw_pad.shape[1]
    xw_pad = xw_pad.astype(jnp.bfloat16)
    tm = _pick_tile(Np_)
    tk = _pick_tile(Np_, (1024, 512, 256, 128), prefer_split=False)
    return pl.pallas_call(
        functools.partial(_adj_matmul_kernel, activation=activation),
        out_shape=jax.ShapeDtypeStruct((Np_, Hp), jnp.float32),
        grid=(Np_ // tm, Np_ // tk),
        in_specs=[
            pl.BlockSpec((tm, tk), lambda i, k: (i, k)),
            pl.BlockSpec((tk, Hp), lambda i, k: (k, 0)),
            pl.BlockSpec((1, Hp), lambda i, k: (0, 0)),
        ],
        out_specs=pl.BlockSpec((tm, Hp), lambda i, k: (i, 0)),
        compiler_params=pltpu.CompilerParams(
            dimension_semantics=("parallel", "arbitrary"),
            vmem_limit_bytes=_VMEM_LIMIT),
    )(A_pre, xw_pad, bias_pad)


# ----------------------------------------------------------------------------
# Gram matrix: z.T @ z (axis-0 contraction in-kernel, bf16 inputs, f32 accum)
# ----------------------------------------------------------------------------
def _gram_kernel(z_ref, o_ref):
    z = z_ref[...]
    partial = lax.dot_general(z, z, (((0,), (0,)), ((), ())),
                              preferred_element_type=jnp.float32)

    @pl.when(pl.program_id(0) == 0)
    def _():
        o_ref[...] = partial

    @pl.when(pl.program_id(0) > 0)
    def _():
        o_ref[...] += partial


def pallas_gram(z):
    n, d = z.shape
    Np_, Dp = _round_up(n, 128), _round_up(d, 128)
    tk = _pick_tile(Np_, (1024, 512, 256, 128), prefer_split=False)
    z_p = _pad2d(z, Np_, Dp).astype(jnp.bfloat16)
    out = pl.pallas_call(
        _gram_kernel,
        out_shape=jax.ShapeDtypeStruct((Dp, Dp), jnp.float32),
        grid=(Np_ // tk,),
        in_specs=[pl.BlockSpec((tk, Dp), lambda k: (k, 0))],
        out_specs=pl.BlockSpec((Dp, Dp), lambda k: (0, 0)),
        compiler_params=pltpu.CompilerParams(
            dimension_semantics=("arbitrary",),
            vmem_limit_bytes=_VMEM_LIMIT),
    )(z_p)
    return out[:d, :d]


# ----------------------------------------------------------------------------
# sce_loss: per-row (1 - cos(x, y))^alpha, row-tiled (rsqrt on the EUP)
# ----------------------------------------------------------------------------
def _sce_kernel(x_ref, y_ref, o_ref, *, alpha):
    x = x_ref[...].astype(jnp.float32)
    y = y_ref[...].astype(jnp.float32)
    xn = x * lax.rsqrt(jnp.maximum(jnp.sum(x * x, axis=-1, keepdims=True), 1e-24))
    yn = y * lax.rsqrt(jnp.maximum(jnp.sum(y * y, axis=-1, keepdims=True), 1e-24))
    cos = jnp.sum(xn * yn, axis=-1, keepdims=True)
    o_ref[...] = (1.0 - cos) ** alpha


def sce_loss(x, y, alpha=3):
    m, f = x.shape
    tr = _pick_divisor_tile(m)
    per_row = pl.pallas_call(
        functools.partial(_sce_kernel, alpha=alpha),
        out_shape=jax.ShapeDtypeStruct((m, 1), jnp.float32),
        grid=(m // tr,),
        in_specs=[pl.BlockSpec((tr, f), lambda i: (i, 0)),
                  pl.BlockSpec((tr, f), lambda i: (i, 0))],
        out_specs=pl.BlockSpec((tr, 1), lambda i: (i, 0)),
        compiler_params=pltpu.CompilerParams(dimension_semantics=("parallel",)),
    )(x.astype(jnp.float32), y.astype(jnp.float32))
    return jnp.mean(per_row)


# ----------------------------------------------------------------------------
# p_minsg: fused two-direction contrastive loss, tiled over (row, col) blocks
# ----------------------------------------------------------------------------
def _minsg_kernel(h1r_ref, h2r_ref, h1ct_ref, h2ct_ref, o_ref, acc_ref, hr_sc,
                  *, inv_temp, n_cols):
    j = pl.program_id(1)
    tr = h1r_ref.shape[0]
    tc = h1ct_ref.shape[1]

    @pl.when(j == 0)
    def _():
        acc_ref[...] = jnp.zeros_like(acc_ref)
        # stack the two row operands once per row-block (reused across all j)
        hr_sc[0:tr, :] = h1r_ref[...]
        hr_sc[tr:2 * tr, :] = h2r_ref[...]

    hr = hr_sc[...]                                                   # (2tr, d)
    # column operands are pre-transposed in the wrapper -> MXU-native dots
    p1 = jnp.dot(hr, h1ct_ref[...], preferred_element_type=jnp.float32)  # [s11; s21]
    p2 = jnp.dot(hr, h2ct_ref[...], preferred_element_type=jnp.float32)  # [s12; s22]
    # stabilized exponentials exp((cos - 1)/T): the exp(-1/T) rescaling cancels in
    # the final ratio, keeps every exp <= 1 (robust for small temperatures).
    # TODO(synk): on v6e/v7x the exp could run in bf16 (EUP-bound); kept f32 for v5e safety.
    e = jnp.exp((p1 - 1.0) * inv_temp) + jnp.exp((p2 - 1.0) * inv_temp)
    col = lax.broadcasted_iota(jnp.int32, (1, tc), 1) + j * tc
    e = jnp.where(col < n_cols, e, 0.0)                               # mask padded cols
    acc_ref[...] += jnp.sum(e, axis=-1, keepdims=True)

    @pl.when(j == pl.num_programs(1) - 1)
    def _():
        h1 = h1r_ref[...].astype(jnp.float32)
        h2 = h2r_ref[...].astype(jnp.float32)
        # between-sim diagonal in log-space (same stabilization)
        d12_log = (jnp.sum(h1 * h2, axis=-1, keepdims=True) - 1.0) * inv_temp
        # refl-sim diagonals computed from the SAME bf16 data that was summed
        d1 = jnp.exp((jnp.sum(h1 * h1, axis=-1, keepdims=True) - 1.0) * inv_temp)
        d2 = jnp.exp((jnp.sum(h2 * h2, axis=-1, keepdims=True) - 1.0) * inv_temp)
        den1 = acc_ref[0:tr, :] - d1          # refl1.sum + between.sum - refl1.diag
        den2 = acc_ref[tr:2 * tr, :] - d2     # refl2.sum + between.sum - refl2.diag
        o_ref[...] = 0.5 * (jnp.log(den1) + jnp.log(den2)) - d12_log


def _row_normalize(h, eps):
    n = jnp.sqrt(jnp.sum(h * h, axis=-1, keepdims=True))
    return h / jnp.maximum(n, eps)


def minsg_loss(h1, h2, temperature):
    # TODO(synk): utils.sim_matrix assumed to be cosine similarity with eps=1e-8 clamp.
    n, d = h1.shape
    inv_temp = 1.0 / float(temperature)
    h1n = _row_normalize(h1.astype(jnp.float32), 1e-8)
    h2n = _row_normalize(h2.astype(jnp.float32), 1e-8)
    Npr, Dp = _round_up(n, 128), _round_up(d, 128)
    h1p = _pad2d(h1n, Npr, Dp).astype(jnp.bfloat16)
    h2p = _pad2d(h2n, Npr, Dp).astype(jnp.bfloat16)
    h1ct = h1p.T                                       # (Dp, Npr), one transpose here
    h2ct = h2p.T
    tr = _pick_tile(Npr, (256, 128))
    tc = _pick_tile(Npr, (256, 128))
    per_row = pl.pallas_call(
        functools.partial(_minsg_kernel, inv_temp=inv_temp, n_cols=n),
        out_shape=jax.ShapeDtypeStruct((Npr, 1), jnp.float32),
        grid=(Npr // tr, Npr // tc),
        in_specs=[
            pl.BlockSpec((tr, Dp), lambda i, j: (i, 0)),   # h1 row block
            pl.BlockSpec((tr, Dp), lambda i, j: (i, 0)),   # h2 row block
            pl.BlockSpec((Dp, tc), lambda i, j: (0, j)),   # h1^T col block
            pl.BlockSpec((Dp, tc), lambda i, j: (0, j)),   # h2^T col block
        ],
        out_specs=pl.BlockSpec((tr, 1), lambda i, j: (i, 0)),
        scratch_shapes=[pltpu.VMEM((2 * tr, 1), jnp.float32),
                        pltpu.VMEM((2 * tr, Dp), jnp.bfloat16)],
        compiler_params=pltpu.CompilerParams(
            dimension_semantics=("parallel", "arbitrary"),
            vmem_limit_bytes=_VMEM_LIMIT),
    )(h1p, h2p, h1ct, h2ct)
    return jnp.mean(per_row[:n, 0])


# ----------------------------------------------------------------------------
# Plain-JAX glue
# ----------------------------------------------------------------------------
def binary_cross_entropy(p, t):
    p = jnp.clip(p, 1e-12, 1.0 - 1e-12)
    return jnp.mean(-(t * jnp.log(p) + (1.0 - t) * jnp.log(1.0 - p)))


def xavier_uniform(key, fan_in, fan_out):
    bound = math.sqrt(6.0 / (fan_in + fan_out))
    return jax.random.uniform(key, (fan_in, fan_out), jnp.float32, -bound, bound)


def frobenius_norm(m):
    return jnp.sqrt(jnp.sum(m * m))


# ----------------------------------------------------------------------------
# Module
# ----------------------------------------------------------------------------
class PretrainModulePallas:
    # TODO(synk): the external `big_model` GNN and DGL sparse graphs have no direct
    # Pallas equivalent; big_model is modeled as a single dense GraphConv encoder
    # relu(A_hat @ (X @ W_enc) + b_enc) and graphs are dense normalized adjacencies.
    def __init__(self, key, in_feats, hid_dim, predictor_dim):
        ks = jax.random.split(key, 10)
        self.in_feats = in_feats
        self.hid_dim = hid_dim
        self.hid_pad = _round_up(hid_dim, 128)
        self.in_pad = _round_up(in_feats, 128)

        # synthetic big_model encoder (bias applied after the A multiply, GraphConv-style)
        self.lin_enc = PreppedLinear(xavier_uniform(ks[0], in_feats, hid_dim))
        self.b_enc_pad = jnp.zeros((1, self.hid_pad), jnp.float32)

        # link predictor heads (xavier weights, zero bias — matches weights_init)
        self.lin_link_hid = PreppedLinear(xavier_uniform(ks[1], hid_dim, predictor_dim))
        self.W_link_cls = xavier_uniform(ks[2], predictor_dim, 1)
        self.b_link_cls = jnp.zeros((1,), jnp.float32)

        # discriminator (uniform(-1/sqrt(h), 1/sqrt(h)) — not an nn.Linear)
        bound = 1.0 / math.sqrt(hid_dim)
        self.disc_weight = jax.random.uniform(
            ks[3], (hid_dim, hid_dim), jnp.float32, -bound, bound)

        # minsg projector MLP (fused 2-layer head)
        self.lin_minsg1 = PreppedLinear(xavier_uniform(ks[4], hid_dim, predictor_dim))
        self.lin_minsg2 = PreppedLinear(xavier_uniform(ks[5], predictor_dim, hid_dim))

        # reconstruction path
        self.recon_mask = jnp.zeros((1, in_feats), jnp.float32)
        self.lin_recon = PreppedLinear(xavier_uniform(ks[6], hid_dim, hid_dim))  # no bias
        self.lin_dec = PreppedLinear(xavier_uniform(ks[7], hid_dim, in_feats))   # GraphConv weight
        self.b_dec_pad = jnp.zeros((1, self.in_pad), jnp.float32)

        # graph_matcher / metis_cls / par_cls / decor heads exist in the torch module
        # but are never used in forward(); omitted.

        self._adj_cache = {}  # id(A_hat) -> (padded bf16 A, N)

    # ---- adjacency pre-pad / pre-cast cache ---------------------------------
    def _prep_adj(self, A_hat):
        key = id(A_hat)
        cached = self._adj_cache.get(key)
        if cached is not None and cached[1] == A_hat.shape[0]:
            return cached[0]
        N = A_hat.shape[0]
        Np_ = _round_up(N, 128)
        A_pre = _pad2d(A_hat.astype(jnp.bfloat16), Np_, Np_)
        self._adj_cache[key] = (A_pre, N)
        return A_pre

    # ---- synthetic big_model (XW matmul + streamed A pass) ------------------
    def big_model(self, g, X=None):
        A_hat, feat = g
        if X is None:
            X = feat
        return self._encode_one(A_hat, X)

    def _encode_one(self, A_hat, X):
        A_pre = self._prep_adj(A_hat)
        N = A_hat.shape[0]
        xw = linear(X, self.lin_enc, keep_padded=True)          # (Np, hid_pad) f32
        h = adj_matmul(A_pre, xw, self.b_enc_pad, activation="relu")
        return h[:N, :self.hid_dim]

    def _encode_two(self, A_hat, X1, X2):
        """Two feature sets on the SAME graph: stream A once over [X1W | X2W]."""
        A_pre = self._prep_adj(A_hat)
        N = A_hat.shape[0]
        Np_ = A_pre.shape[0]
        xw = linear(jnp.concatenate([X1, X2], axis=0), self.lin_enc)  # (2N, hid)
        hp = self.hid_pad
        xw_cat = jnp.concatenate(
            [_pad2d(xw[:N], Np_, hp), _pad2d(xw[N:2 * N], Np_, hp)], axis=1)
        b_cat = jnp.concatenate([self.b_enc_pad, self.b_enc_pad], axis=1)
        h = adj_matmul(A_pre, xw_cat, b_cat, activation="relu")       # (Np, 2*hid_pad)
        h1 = h[:N, :self.hid_dim]
        h2 = h[:N, hp:hp + self.hid_dim]
        return h1, h2

    # ---- pretext tasks ------------------------------------------------------
    def p_link(self, sg, pos_u, pos_v, neg_u, neg_v):
        h = self.big_model(sg)
        h = h / jnp.maximum(jnp.linalg.norm(h, axis=1, keepdims=True), 1e-12)
        h = linear(h, self.lin_link_hid, activation="relu")
        h_pos = h[pos_u] * h[pos_v]
        h_neg = h[neg_u] * h[neg_v]
        # classifier head has output width 1 -> cheap VPU row reduction (no 1-lane MXU)
        w_cls = self.W_link_cls[:, 0]
        pos_logits = jnp.sum(h_pos * w_cls[None, :], axis=-1) + self.b_link_cls[0]
        neg_logits = jnp.sum(h_neg * w_cls[None, :], axis=-1) + self.b_link_cls[0]
        logits = jnp.concatenate([jax.nn.sigmoid(pos_logits), jax.nn.sigmoid(neg_logits)])
        target = jnp.concatenate([jnp.ones_like(pos_logits), jnp.zeros_like(neg_logits)])
        return binary_cross_entropy(logits, target)

    def p_ming(self, bg, feat, cor_feat):
        A_hat, _ = bg
        positive, negative = self._encode_two(A_hat, feat, cor_feat)  # one A pass
        summary = jax.nn.sigmoid(jnp.mean(positive, axis=0))
        # tiny hid x hid matvec + row reductions -> plain JAX / VPU (no width-1 MXU)
        w_sum = self.disc_weight @ summary
        pos = jnp.sum(positive * w_sum[None, :], axis=-1)
        neg = jnp.sum(negative * w_sum[None, :], axis=-1)
        l1 = binary_cross_entropy(jax.nn.sigmoid(pos), jnp.ones_like(pos))
        l2 = binary_cross_entropy(jax.nn.sigmoid(neg), jnp.zeros_like(neg))
        return l1 + l2

    def p_minsg(self, g1, feat1, g2, feat2, temperature):
        A1, _ = g1
        A2, _ = g2
        if A1 is A2:
            e1, e2 = self._encode_two(A1, feat1, feat2)          # one A pass
        else:
            e1 = self.big_model(g1, feat1)
            e2 = self.big_model(g2, feat2)
        N = e1.shape[0]
        # single fused projector-MLP call over both views (row-stacked)
        h = mlp2(jnp.concatenate([e1, e2], axis=0), self.lin_minsg1, self.lin_minsg2)
        h1, h2 = h[:N], h[N:2 * N]
        return minsg_loss(h1, h2, temperature)

    def p_decor(self, g1, g2, lambd=0.001):
        A1, f1 = g1
        A2, f2 = g2
        N = f1.shape[0]
        if A1 is A2:
            h1, h2 = self._encode_two(A1, f1, f2)
        else:
            h1 = self.big_model(g1, f1)
            h2 = self.big_model(g2, f2)
        z1 = (h1 - jnp.mean(h1, axis=0)) / jnp.std(h1, axis=0, ddof=1)
        z2 = (h2 - jnp.mean(h2, axis=0)) / jnp.std(h2, axis=0, ddof=1)
        c1 = pallas_gram(z1) / N
        c2 = pallas_gram(z2) / N
        c = (z1 - z2) / N
        iden = jnp.eye(c1.shape[0], dtype=jnp.float32)
        loss_inv = frobenius_norm(c)
        loss_dec1 = frobenius_norm(iden - c1)
        loss_dec2 = frobenius_norm(iden - c2)
        return loss_inv + lambd * (loss_dec1 + loss_dec2)

    def p_recon(self, g, mask_nodes):
        A_hat, feat = g
        N = feat.shape[0]
        x_target = feat[mask_nodes]
        n_mask = mask_nodes.shape[0]
        feat2 = feat.at[mask_nodes].set(0.0)
        feat2 = feat2.at[mask_nodes].add(
            jnp.broadcast_to(self.recon_mask, (n_mask, self.in_feats)))
        h = self.big_model(g, feat2)
        h = linear(h, self.lin_recon)                              # recon_enc_dec (no bias)
        h = h.at[mask_nodes].set(0.0)
        # decoder GraphConv: A_hat @ (h @ W_dec) + b_dec
        A_pre = self._prep_adj(A_hat)
        hw = linear(h, self.lin_dec, keep_padded=True)             # (Np, in_pad)
        x_full = adj_matmul(A_pre, hw, self.b_dec_pad)[:N, :self.in_feats]
        x_pred = x_full[mask_nodes]
        return sce_loss(x_pred, x_target, alpha=3)

    # ---- forward ------------------------------------------------------------
    def forward(self, sample, opt):
        res = {}
        if "p_link" in sample:
            d = sample["p_link"]
            res["p_link"] = self.p_link(d[0], d[1], d[2], d[3], d[4])
        if "p_ming" in sample:
            d = sample["p_ming"]
            res["p_ming"] = self.p_ming(d[0], d[1], d[2])
        if "p_minsg" in sample:
            d = sample["p_minsg"]
            res["p_minsg"] = self.p_minsg(d[0], d[1], d[2], d[3],
                                          temperature=opt.temperature_minsg)
        if "p_decor" in sample:
            d = sample["p_decor"]
            res["p_decor"] = self.p_decor(d[0], d[1], lambd=opt.decor_lamb)
        if "p_recon" in sample:
            d = sample["p_recon"]
            res["p_recon"] = self.p_recon(d[0], d[1])
        return res


# ----------------------------------------------------------------------------
# Example inputs
# ----------------------------------------------------------------------------
def make_graph(key, n, in_feats):
    # ring graph + self loops, symmetric normalization D^{-1/2} A D^{-1/2}
    idx = jnp.arange(n)
    A = jnp.zeros((n, n), jnp.float32)
    A = A.at[idx, (idx + 1) % n].set(1.0)
    A = A.at[idx, (idx - 1) % n].set(1.0)
    A = A + jnp.eye(n, dtype=jnp.float32)
    dinv = 1.0 / jnp.sqrt(A.sum(axis=1))
    A_hat = A * dinv[:, None] * dinv[None, :]
    feat = jax.random.normal(key, (n, in_feats), jnp.float32)
    return A_hat, feat


class _Opt:
    device = None
    temperature_minsg = 0.5
    decor_lamb = 1e-3


if __name__ == "__main__":
    key = jax.random.PRNGKey(0)
    keys = jax.random.split(key, 10)

    N, IN_FEATS, HID, PRED = 64, 16, 32, 32
    P = 16  # pos/neg edges

    module = PretrainModulePallas(keys[0], IN_FEATS, HID, PRED)

    A_hat, feat = make_graph(keys[1], N, IN_FEATS)
    g = (A_hat, feat)
    feat_b = feat + 0.1 * jax.random.normal(keys[2], feat.shape, jnp.float32)
    g2 = (A_hat, feat_b)  # same adjacency object -> batched A pass in p_minsg / p_decor

    pos_u = jax.random.randint(keys[3], (P,), 0, N)
    pos_v = jax.random.randint(keys[4], (P,), 0, N)
    neg_u = jax.random.randint(keys[5], (P,), 0, N)
    neg_v = jax.random.randint(keys[6], (P,), 0, N)
    cor_feat = jax.random.permutation(keys[7], feat, axis=0)
    mask_nodes = jnp.arange(0, N, 4)  # 16 masked nodes

    sample = {
        "p_link": (g, pos_u, pos_v, neg_u, neg_v),
        "p_ming": (g, feat, cor_feat),
        "p_minsg": (g, feat, g2, feat_b),
        "p_decor": (g, g2),
        "p_recon": (g, mask_nodes),
    }

    res = module.forward(sample, _Opt())
    jax.block_until_ready(res)
    print("KERNEL_OK")
</pallas_src>

<mosaic_0001>
module attributes {stable_mosaic.version = 11 : i64} {
  func.func @_linear_kernel(%arg0: i32, %arg1: i32, %arg2: i32, %arg3: memref<128x128xbf16, #tpu.memory_space<vmem>>, %arg4: memref<128x128xbf16, #tpu.memory_space<vmem>>, %arg5: memref<1x128xf32, #tpu.memory_space<vmem>>, %arg6: memref<128x128xf32, #tpu.memory_space<vmem>>) attributes {dimension_semantics = [#tpu.dimension_semantics<parallel>, #tpu.dimension_semantics<parallel>, #tpu.dimension_semantics<arbitrary>], iteration_bounds = array<i64: 1, 1, 1>, scalar_prefetch = 0 : i64, scratch_operands = 0 : i64, tpu.core_type = #tpu.core_type<tc>, window_params = [{transform_indices = @transform_0, window_bounds = array<i64: 128, 128>}, {transform_indices = @transform_1, window_bounds = array<i64: 128, 128>}, {transform_indices = @transform_2, window_bounds = array<i64: 1, 128>}, {transform_indices = @transform_3, window_bounds = array<i64: 128, 128>}]} {
    %c0 = arith.constant 0 : index
    %c0_0 = arith.constant 0 : index
    %0 = vector.load %arg3[%c0, %c0_0] : memref<128x128xbf16, #tpu.memory_space<vmem>>, vector<128x128xbf16>
    %c0_1 = arith.constant 0 : index
    %c0_2 = arith.constant 0 : index
    %1 = vector.load %arg4[%c0_1, %c0_2] : memref<128x128xbf16, #tpu.memory_space<vmem>>, vector<128x128xbf16>
    %cst = arith.constant dense<0.000000e+00> : vector<128x128xf32>
    %2 = tpu.matmul %0, %1, %cst {dimension_numbers = #tpu.dot_dimension_numbers<[1], [0], [0], [1], [0, 0, 1, 1], [], []>} : vector<128x128xbf16>, vector<128x128xbf16>, vector<128x128xf32> -> vector<128x128xf32>
    %c0_i32 = arith.constant 0 : i32
    %3 = arith.cmpi eq, %arg2, %c0_i32 : i32
    %4 = arith.extui %3 : i1 to i32
    %c0_i32_3 = arith.constant 0 : i32
    %5 = arith.cmpi ne, %4, %c0_i32_3 : i32
    scf.if %5 {
      %c0_8 = arith.constant 0 : index
      %c0_9 = arith.constant 0 : index
      %12 = vector.load %arg6[%c0_8, %c0_9] : memref<128x128xf32, #tpu.memory_space<vmem>>, vector<128x128xf32>
      tpu.vector_store %arg6[%c0_8, %c0_9], %2 {strides = array<i32>} : memref<128x128xf32, #tpu.memory_space<vmem>>, vector<128x128xf32>,
    } else {
    }
    %c0_i32_4 = arith.constant 0 : i32
    %6 = arith.cmpi sgt, %arg2, %c0_i32_4 : i32
    %7 = arith.extui %6 : i1 to i32
    %c0_i32_5 = arith.constant 0 : i32
    %8 = arith.cmpi ne, %7, %c0_i32_5 : i32
    scf.if %8 {
      %c0_8 = arith.constant 0 : index
      %c0_9 = arith.constant 0 : index
      %12 = vector.load %arg6[%c0_8, %c0_9] : memref<128x128xf32, #tpu.memory_space<vmem>>, vector<128x128xf32>
      %13 = arith.addf %12, %2 : vector<128x128xf32>
      %c0_10 = arith.constant 0 : index
      %c0_11 = arith.constant 0 : index
      %14 = vector.load %arg6[%c0_10, %c0_11] : memref<128x128xf32, #tpu.memory_space<vmem>>, vector<128x128xf32>
      tpu.vector_store %arg6[%c0_10, %c0_11], %13 {strides = array<i32>} : memref<128x128xf32, #tpu.memory_space<vmem>>, vector<128x128xf32>,
    } else {
    }
    %c0_i32_6 = arith.constant 0 : i32
    %9 = arith.cmpi eq, %arg2, %c0_i32_6 : i32
    %10 = arith.extui %9 : i1 to i32
    %c0_i32_7 = arith.constant 0 : i32
    %11 = arith.cmpi ne, %10, %c0_i32_7 : i32
    scf.if %11 {
      %c0_8 = arith.constant 0 : index
      %c0_9 = arith.constant 0 : index
      %12 = vector.load %arg6[%c0_8, %c0_9] : memref<128x128xf32, #tpu.memory_space<vmem>>, vector<128x128xf32>
      %c0_10 = arith.constant 0 : index
      %c0_11 = arith.constant 0 : index
      %13 = vector.load %arg5[%c0_10, %c0_11] : memref<1x128xf32, #tpu.memory_space<vmem>>, vector<1x128xf32>
      %14 = vector.broadcast %13 : vector<1x128xf32> to vector<128x128xf32>
      %15 = arith.addf %12, %14 : vector<128x128xf32>
      %c0_12 = arith.constant 0 : index
      %c0_13 = arith.constant 0 : index
      %16 = vector.load %arg6[%c0_12, %c0_13] : memref<128x128xf32, #tpu.memory_space<vmem>>, vector<128x128xf32>
      tpu.vector_store %arg6[%c0_12, %c0_13], %15 {strides = array<i32>} : memref<128x128xf32, #tpu.memory_space<vmem>>, vector<128x128xf32>,
    } else {
    }
    return
  }
  func.func @transform_0(%arg0: i32, %arg1: i32, %arg2: i32) -> (i32, i32) {
    %c0_i32 = arith.constant 0 : i32
    return %arg0, %arg2 : i32, i32
  }
  func.func @transform_1(%arg0: i32, %arg1: i32, %arg2: i32) -> (i32, i32) {
    %c0_i32 = arith.constant 0 : i32
    return %arg2, %arg1 : i32, i32
  }
  func.func @transform_2(%arg0: i32, %arg1: i32, %arg2: i32) -> (i32, i32) {
    %c0_i32 = arith.constant 0 : i32
    %c0_i32_0 = arith.constant 0 : i32
    return %c0_i32, %arg1 : i32, i32
  }
  func.func @transform_3(%arg0: i32, %arg1: i32, %arg2: i32) -> (i32, i32) {
    %c0_i32 = arith.constant 0 : i32
    return %arg0, %arg1 : i32, i32
  }
}

</mosaic_0001>

<llo_original>
// kernel: tpu_custom_call.1
$region0: #{tpu_custom_call.1}
  #allocation0 [shape = 'u32[]', space=smem, size = 0x4, offset = 0x4, fixed_abs, tag = 'smem constant byte address 0x4 - core index']
  #allocation1 [shape = 'u32[144,128]{1,0:T(1,128)}', space=vmem, size = 0x12000, scoped, tag = 'internal scratch']
  %s0 = inlined_call_operand.hbm [shape: bf16[128,128], index: 0, kind: input, shape index: {}]
  %s1 = inlined_call_operand.hbm [shape: bf16[128,128], index: 1, kind: input, shape index: {}]
  %s2 = inlined_call_operand.vmem [shape: f32[1,128], index: 2, kind: input, shape index: {}]
  %s3 = inlined_call_operand.hbm [shape: f32[128,128], index: 3, kind: output, shape index: {}]
  %s4 = sld [smem:[#allocation0]]
  $region42: #{tpu_custom_call.1} parent=0
    _
  %s6 = ssub.s32 1, %s4
  %s7 = scalar_select 0, %s6, %s4
  $region1: #{tpu_custom_call.1} parent=0
    #allocation2 [shape = 'u8[32768]{0}', space=vmem, size = 0x8000, scoped, tag = 'input window, operand 0, single buffered']
    #allocation3 [shape = 's32[1]{0}', space=sflag, size = 0x4, scoped, tag = 'scoped memory for tpu_custom_call.1']
    #allocation4 [shape = 's32[1]{0}', space=sflag, size = 0x4, scoped, tag = 'scoped memory for tpu_custom_call.1']
    #allocation5 [shape = 'u8[32768]{0}', space=vmem, size = 0x8000, scoped, tag = 'input window, operand 1, single buffered']
    #allocation6 [shape = 's32[1]{0}', space=sflag, size = 0x4, scoped, tag = 'scoped memory for tpu_custom_call.1']
    #allocation7 [shape = 'u8[65536]{0}', space=vmem, size = 0x10000, scoped, tag = 'output window, operand 0, single buffered']
    %8 = vsyncpa [#allocation3], 0
    %9 = vsyncpa [#allocation6], 0
    %10 = vsyncpa [#allocation4], 0
    // Predicated region
    $region2: #{tpu_custom_call.1} parent=1 // pred_check
      _
    $region3: #{tpu_custom_call.1} parent=1 // pred_check_branch
      %12 = sbr.rel (0) target = $region5
    $region4: #{tpu_custom_call.1} parent=1 // pred_region
      %s14 = ssub.s32 1024, 1024
      %15 = vsyncadd [#allocation3], %s14
      %s16 = sshll.u32 [#allocation2], 4
      %s17 = int_to_ptr.vmem [resolvable:$true] %s16
      %22 = dma.hbm_to_vmem [thread:$0]  %s0, 1024, %s17, [#allocation3], 64, 64, 4
    $region5: #{tpu_custom_call.1} parent=1 // pred_fallthru
      _
    // Predicated region
    $region6: #{tpu_custom_call.1} parent=1 // pred_check
      _
    $region7: #{tpu_custom_call.1} parent=1 // pred_check_branch
      %24 = sbr.rel (0) target = $region9
    $region8: #{tpu_custom_call.1} parent=1 // pred_region
      %s26 = ssub.s32 1024, 1024
      %27 = vsyncadd [#allocation6], %s26
      %s28 = sshll.u32 [#allocation5], 4
      %s29 = int_to_ptr.vmem [resolvable:$true] %s28
      %34 = dma.hbm_to_vmem [thread:$0]  %s1, 1024, %s29, [#allocation6], 64, 64, 4
    $region9: #{tpu_custom_call.1} parent=1 // pred_fallthru
      _
    // Predicated region
    $region10: #{tpu_custom_call.1} parent=1 // pred_check
      _
    $region11: #{tpu_custom_call.1} parent=1 // pred_check_branch
      %36 = sbr.rel (0) target = $region13
    $region12: #{tpu_custom_call.1} parent=1 // pred_region
      _
    $region13: #{tpu_custom_call.1} parent=1 // pred_fallthru
      _
    // Predicated region
    $region14: #{tpu_custom_call.1} parent=1 // pred_check
      _
    $region15: #{tpu_custom_call.1} parent=1 // pred_check_branch
      %38 = sbr.rel (0) target = $region17
    $region16: #{tpu_custom_call.1} parent=1 // pred_region
      %39 = dma.done [#allocation3], 1024
    $region17: #{tpu_custom_call.1} parent=1 // pred_fallthru
      _
    // Predicated region
    $region18: #{tpu_custom_call.1} parent=1 // pred_check
      _
    $region19: #{tpu_custom_call.1} parent=1 // pred_check_branch
      %41 = sbr.rel (0) target = $region21
    $region20: #{tpu_custom_call.1} parent=1 // pred_region
      %42 = dma.done [#allocation6], 1024
    $region21: #{tpu_custom_call.1} parent=1 // pred_fallthru
      _
    %v44 = vld [vmem:[#allocation2] sm:$0xf]
    %v45 = vld [vmem:[#allocation2 + $0x4] sm:$0xf]
    %v46 = vld [vmem:[#allocation2 + $0x8] sm:$0xf]
    %v47 = vld [vmem:[#allocation2 + $0xc] sm:$0xf]
    %v48 = vld [vmem:[#allocation2 + $0x10] sm:$0xf]
    %v49 = vld [vmem:[#allocation2 + $0x14] sm:$0xf]
    %v50 = vld [vmem:[#allocation2 + $0x18] sm:$0xf]
    %v51 = vld [vmem:[#allocation2 + $0x1c] sm:$0xf]
    %v52 = vld [vmem:[#allocation2 + $0x20] sm:$0xf]
    %v53 = vld [vmem:[#allocation2 + $0x24] sm:$0xf]
    %v54 = vld [vmem:[#allocation2 + $0x28] sm:$0xf]
    %v55 = vld [vmem:[#allocation2 + $0x2c] sm:$0xf]
    %v56 = vld [vmem:[#allocation2 + $0x30] sm:$0xf]
    %v57 = vld [vmem:[#allocation2 + $0x34] sm:$0xf]
    %v58 = vld [vmem:[#allocation2 + $0x38] sm:$0xf]
    %v59 = vld [vmem:[#allocation2 + $0x3c] sm:$0xf]
    %v60 = vld [vmem:[#allocation5] sm:$0xf]
    %v61 = vld [vmem:[#allocation5 + $0x4] sm:$0xf]
    %v62 = vld [vmem:[#allocation5 + $0x8] sm:$0xf]
    %v63 = vld [vmem:[#allocation5 + $0xc] sm:$0xf]
    %v64 = vld [vmem:[#allocation5 + $0x10] sm:$0xf]
    %v65 = vld [vmem:[#allocation5 + $0x14] sm:$0xf]
    %v66 = vld [vmem:[#allocation5 + $0x18] sm:$0xf]
    %v67 = vld [vmem:[#allocation5 + $0x1c] sm:$0xf]
    %v68 = vld [vmem:[#allocation5 + $0x20] sm:$0xf]
    %v69 = vld [vmem:[#allocation5 + $0x24] sm:$0xf]
    %v70 = vld [vmem:[#allocation5 + $0x28] sm:$0xf]
    %v71 = vld [vmem:[#allocation5 + $0x2c] sm:$0xf]
    %v72 = vld [vmem:[#allocation5 + $0x30] sm:$0xf]
    %v73 = vld [vmem:[#allocation5 + $0x34] sm:$0xf]
    %v74 = vld [vmem:[#allocation5 + $0x38] sm:$0xf]
    %v75 = vld [vmem:[#allocation5 + $0x3c] sm:$0xf]
    %v92 = vunpack.c.l.b16 %v44
    %v93 = vunpack.c.l.b16 %v45
    %v94 = vunpack.c.l.b16 %v46
    %v95 = vunpack.c.l.b16 %v47
    %v96 = vunpack.c.l.b16 %v48
    %v97 = vunpack.c.l.b16 %v49
    %v98 = vunpack.c.l.b16 %v50
    %v99 = vunpack.c.l.b16 %v51
    %v100 = vunpack.c.l.b16 %v52
    %v101 = vunpack.c.l.b16 %v53
    %v102 = vunpack.c.l.b16 %v54
    %v103 = vunpack.c.l.b16 %v55
    %v104 = vunpack.c.l.b16 %v56
    %v105 = vunpack.c.l.b16 %v57
    %v106 = vunpack.c.l.b16 %v58
    %v107 = vunpack.c.l.b16 %v59
    %v108 = vpack.c.b16 %v93, %v92
    %v109 = vpack.c.b16 %v95, %v94
    %v110 = vpack.c.b16 %v97, %v96
    %v111 = vpack.c.b16 %v99, %v98
    %v112 = vpack.c.b16 %v101, %v100
    %v113 = vpack.c.b16 %v103, %v102
    %v114 = vpack.c.b16 %v105, %v104
    %v115 = vpack.c.b16 %v107, %v106
    %v140 = vunpack.c.l.b16 %v60
    %v141 = vunpack.c.l.b16 %v61
    %v142 = vunpack.c.l.b16 %v62
    %v143 = vunpack.c.l.b16 %v63
    %v144 = vunpack.c.l.b16 %v64
    %v145 = vunpack.c.l.b16 %v65
    %v146 = vunpack.c.l.b16 %v66
    %v147 = vunpack.c.l.b16 %v67
    %v148 = vunpack.c.l.b16 %v68
    %v149 = vunpack.c.l.b16 %v69
    %v150 = vunpack.c.l.b16 %v70
    %v151 = vunpack.c.l.b16 %v71
    %v152 = vunpack.c.l.b16 %v72
    %v153 = vunpack.c.l.b16 %v73
    %v154 = vunpack.c.l.b16 %v74
    %v155 = vunpack.c.l.b16 %v75
    %v156 = vpack.c.b16 %v141, %v140
    %v157 = vpack.c.b16 %v143, %v142
    %v158 = vpack.c.b16 %v145, %v144
    %v159 = vpack.c.b16 %v147, %v146
    %v160 = vpack.c.b16 %v149, %v148
    %v161 = vpack.c.b16 %v151, %v150
    %v162 = vpack.c.b16 %v153, %v152
    %v163 = vpack.c.b16 %v155, %v154
    %172 = vmatprep.subr.bf16.mxu0 0
    %173 = vmatpush1.bf16.msra.mxu0 %v156
    %174 = vmatprep.subr.bf16.mxu0 0
    %175 = vmatpush1.bf16.msra.mxu0 %v157
    %176 = vmatprep.subr.bf16.mxu0 0
    %177 = vmatpush1.bf16.msra.mxu0 %v158
    %178 = vmatprep.subr.bf16.mxu0 0
    %179 = vmatpush1.bf16.msra.mxu0 %v159
    %180 = vmatprep.subr.bf16.mxu0 0
    %181 = vmatpush1.bf16.msra.mxu0 %v160
    %182 = vmatprep.subr.bf16.mxu0 0
    %183 = vmatpush1.bf16.msra.mxu0 %v161
    %184 = vmatprep.subr.bf16.mxu0 0
    %185 = vmatpush1.bf16.msra.mxu0 %v162
    %186 = vmatprep.subr.bf16.mxu0 0
    %187 = vmatpush1.bf16.msra.mxu0 %v163
    %188 = vmatprep.subr.bf16.mxu0 0
    %189 = vmatpush1.bf16.msra.mxu0 0
    %190 = vmatprep.subr.bf16.mxu0 0
    %191 = vmatpush1.bf16.msra.mxu0 0
    %192 = vmatprep.subr.bf16.mxu0 0
    %193 = vmatpush1.bf16.msra.mxu0 0
    %194 = vmatprep.subr.bf16.mxu0 0
    %195 = vmatpush1.bf16.msra.mxu0 0
    %196 = vmatprep.subr.bf16.mxu0 0
    %197 = vmatpush1.bf16.msra.mxu0 0
    %198 = vmatprep.subr.bf16.mxu0 0
    %199 = vmatpush1.bf16.msra.mxu0 0
    %200 = vmatprep.subr.bf16.mxu0 0
    %201 = vmatpush1.bf16.msra.mxu0 0
    %202 = vmatprep.subr.bf16.mxu0 0
    %203 = vmatpush1.bf16.msra.mxu0 0
    %204 = vmatprep.mubr.bf16.mxu0 0
    %205 = vmatmul.mubr.bf16.gmra.mrb[0].mxu0 %v108
    %v206 = vpop.f32.mrb[0].mxu0
    %v207 = vadd.f32 0.0, %v206
    %v208 = vpop.f32.mrb[0].mxu0
    %v209 = vpop.f32.mrb[0].mxu0
    %v210 = vadd.f32 0.0, %v209
    %v211 = vpop.f32.mrb[0].mxu0
    %212 = vmatprep.mubr.bf16.mxu0 0
    %213 = vmatmul.mubr.bf16.gmra.mrb[0].mxu0 %v109
    %v214 = vpop.f32.mrb[0].mxu0
    %v215 = vadd.f32 0.0, %v214
    %v216 = vpop.f32.mrb[0].mxu0
    %v217 = vpop.f32.mrb[0].mxu0
    %v218 = vadd.f32 0.0, %v217
    %v219 = vpop.f32.mrb[0].mxu0
    %220 = vmatprep.mubr.bf16.mxu0 0
    %221 = vmatmul.mubr.bf16.gmra.mrb[0].mxu0 %v110
    %v222 = vpop.f32.mrb[0].mxu0
    %v223 = vadd.f32 0.0, %v222
    %v224 = vpop.f32.mrb[0].mxu0
    %v225 = vpop.f32.mrb[0].mxu0
    %v226 = vadd.f32 0.0, %v225
    %v227 = vpop.f32.mrb[0].mxu0
    %228 = vmatprep.mubr.bf16.mxu0 0
    %229 = vmatmul.mubr.bf16.gmra.mrb[0].mxu0 %v111
    %v230 = vpop.f32.mrb[0].mxu0
    %v231 = vadd.f32 0.0, %v230
    %v232 = vpop.f32.mrb[0].mxu0
    %v233 = vpop.f32.mrb[0].mxu0
    %v234 = vadd.f32 0.0, %v233
    %v235 = vpop.f32.mrb[0].mxu0
    %236 = vmatprep.mubr.bf16.mxu0 0
    %237 = vmatmul.mubr.bf16.gmra.mrb[0].mxu0 %v112
    %v238 = vpop.f32.mrb[0].mxu0
    %v239 = vadd.f32 0.0, %v238
    %v240 = vpop.f32.mrb[0].mxu0
    %v241 = vpop.f32.mrb[0].mxu0
    %v242 = vadd.f32 0.0, %v241
    %v243 = vpop.f32.mrb[0].mxu0
    %244 = vmatprep.mubr.bf16.mxu0 0
    %245 = vmatmul.mubr.bf16.gmra.mrb[0].mxu0 %v113
    %v246 = vpop.f32.mrb[0].mxu0
    %v247 = vadd.f32 0.0, %v246
    %v248 = vpop.f32.mrb[0].mxu0
    %v249 = vpop.f32.mrb[0].mxu0
    %v250 = vadd.f32 0.0, %v249
    %v251 = vpop.f32.mrb[0].mxu0
    %252 = vmatprep.mubr.bf16.mxu0 0
    %253 = vmatmul.mubr.bf16.gmra.mrb[0].mxu0 %v114
    %v254 = vpop.f32.mrb[0].mxu0
    %v255 = vadd.f32 0.0, %v254
    %v256 = vpop.f32.mrb[0].mxu0
    %v257 = vpop.f32.mrb[0].mxu0
    %v258 = vadd.f32 0.0, %v257
    %v259 = vpop.f32.mrb[0].mxu0
    %260 = vmatprep.mubr.bf16.mxu0 0
    %261 = vmatmul.mubr.bf16.gmra.mrb[0].mxu0 %v115
    %v262 = vpop.f32.mrb[0].mxu0
    %v263 = vadd.f32 0.0, %v262
    %v264 = vpop.f32.mrb[0].mxu0
    %v265 = vpop.f32.mrb[0].mxu0
    %v266 = vadd.f32 0.0, %v265
    %v267 = vpop.f32.mrb[0].mxu0
    %268 = vdwg.mxu0
    %p269 = scmp.eq.s32.totalorder 0, 0
    // Predicated region
    $region22: #{tpu_custom_call.1} parent=1 // pred_check
      %p270 = pneg %p269
    $region23: #{tpu_custom_call.1} parent=1 // pred_check_branch
      %272 = sbr.rel (%p270) target = $region25
    $region24: #{tpu_custom_call.1} parent=1 // pred_region
      %273 = vst [vmem:[#allocation7] sm:$0xff] %v207
      %274 = vst [vmem:[#allocation7 + $0x8] sm:$0xff] %v210
      %275 = vst [vmem:[#allocation7 + $0x10] sm:$0xff] %v215
      %276 = vst [vmem:[#allocation7 + $0x18] sm:$0xff] %v218
      %277 = vst [vmem:[#allocation7 + $0x20] sm:$0xff] %v223
      %278 = vst [vmem:[#allocation7 + $0x28] sm:$0xff] %v226
      %279 = vst [vmem:[#allocation7 + $0x30] sm:$0xff] %v231
      %280 = vst [vmem:[#allocation7 + $0x38] sm:$0xff] %v234
      %281 = vst [vmem:[#allocation7 + $0x40] sm:$0xff] %v239
      %282 = vst [vmem:[#allocation7 + $0x48] sm:$0xff] %v242
      %283 = vst [vmem:[#allocation7 + $0x50] sm:$0xff] %v247
      %284 = vst [vmem:[#allocation7 + $0x58] sm:$0xff] %v250
      %285 = vst [vmem:[#allocation7 + $0x60] sm:$0xff] %v255
      %286 = vst [vmem:[#allocation7 + $0x68] sm:$0xff] %v258
      %287 = vst [vmem:[#allocation7 + $0x70] sm:$0xff] %v263
      %288 = vst [vmem:[#allocation7 + $0x78] sm:$0xff] %v266
    $region25: #{tpu_custom_call.1} parent=1 // pred_fallthru
      _
    %p289 = scmp.gt.s32.totalorder 0, 0
    // Predicated region
    $region26: #{tpu_custom_call.1} parent=1 // pred_check
      %p290 = pneg %p289
    $region27: #{tpu_custom_call.1} parent=1 // pred_check_branch
      %292 = sbr.rel (%p290) target = $region29
    $region28: #{tpu_custom_call.1} parent=1 // pred_region
      %v293 = vld [vmem:[#allocation7] sm:$0xff]
      %v294 = vld [vmem:[#allocation7 + $0x8] sm:$0xff]
      %v295 = vld [vmem:[#allocation7 + $0x10] sm:$0xff]
      %v296 = vld [vmem:[#allocation7 + $0x18] sm:$0xff]
      %v297 = vld [vmem:[#allocation7 + $0x20] sm:$0xff]
      %v298 = vld [vmem:[#allocation7 + $0x28] sm:$0xff]
      %v299 = vld [vmem:[#allocation7 + $0x30] sm:$0xff]
      %v300 = vld [vmem:[#allocation7 + $0x38] sm:$0xff]
      %v301 = vld [vmem:[#allocation7 + $0x40] sm:$0xff]
      %v302 = vld [vmem:[#allocation7 + $0x48] sm:$0xff]
      %v303 = vld [vmem:[#allocation7 + $0x50] sm:$0xff]
      %v304 = vld [vmem:[#allocation7 + $0x58] sm:$0xff]
      %v305 = vld [vmem:[#allocation7 + $0x60] sm:$0xff]
      %v306 = vld [vmem:[#allocation7 + $0x68] sm:$0xff]
      %v307 = vld [vmem:[#allocation7 + $0x70] sm:$0xff]
      %v308 = vld [vmem:[#allocation7 + $0x78] sm:$0xff]
      %v309 = vadd.f32 %v293, %v207
      %v310 = vadd.f32 %v294, %v210
      %v311 = vadd.f32 %v295, %v215
      %v312 = vadd.f32 %v296, %v218
      %v313 = vadd.f32 %v297, %v223
      %v314 = vadd.f32 %v298, %v226
      %v315 = vadd.f32 %v299, %v231
      %v316 = vadd.f32 %v300, %v234
      %v317 = vadd.f32 %v301, %v239
      %v318 = vadd.f32 %v302, %v242
      %v319 = vadd.f32 %v303, %v247
      %v320 = vadd.f32 %v304, %v250
      %v321 = vadd.f32 %v305, %v255
      %v322 = vadd.f32 %v306, %v258
      %v323 = vadd.f32 %v307, %v263
      %v324 = vadd.f32 %v308, %v266
      %325 = vst [vmem:[#allocation7] sm:$0xff] %v309
      %326 = vst [vmem:[#allocation7 + $0x8] sm:$0xff] %v310
      %327 = vst [vmem:[#allocation7 + $0x10] sm:$0xff] %v311
      %328 = vst [vmem:[#allocation7 + $0x18] sm:$0xff] %v312
      %329 = vst [vmem:[#allocation7 + $0x20] sm:$0xff] %v313
      %330 = vst [vmem:[#allocation7 + $0x28] sm:$0xff] %v314
      %331 = vst [vmem:[#allocation7 + $0x30] sm:$0xff] %v315
      %332 = vst [vmem:[#allocation7 + $0x38] sm:$0xff] %v316
      %333 = vst [vmem:[#allocation7 + $0x40] sm:$0xff] %v317
      %334 = vst [vmem:[#allocation7 + $0x48] sm:$0xff] %v318
      %335 = vst [vmem:[#allocation7 + $0x50] sm:$0xff] %v319
      %336 = vst [vmem:[#allocation7 + $0x58] sm:$0xff] %v320
      %337 = vst [vmem:[#allocation7 + $0x60] sm:$0xff] %v321
      %338 = vst [vmem:[#allocation7 + $0x68] sm:$0xff] %v322
      %339 = vst [vmem:[#allocation7 + $0x70] sm:$0xff] %v323
      %340 = vst [vmem:[#allocation7 + $0x78] sm:$0xff] %v324
    $region29: #{tpu_custom_call.1} parent=1 // pred_fallthru
      _
    // Predicated region
    $region30: #{tpu_custom_call.1} parent=1 // pred_check
      %p341 = pneg %p269
    $region31: #{tpu_custom_call.1} parent=1 // pred_check_branch
      %343 = sbr.rel (%p341) target = $region33
    $region32: #{tpu_custom_call.1} parent=1 // pred_region
      %v344 = vld [vmem:[#allocation7] sm:$0xff]
      %v345 = vld [vmem:[#allocation7 + $0x8] sm:$0xff]
      %v346 = vld [vmem:[#allocation7 + $0x10] sm:$0xff]
      %v347 = vld [vmem:[#allocation7 + $0x18] sm:$0xff]
      %v348 = vld [vmem:[#allocation7 + $0x20] sm:$0xff]
      %v349 = vld [vmem:[#allocation7 + $0x28] sm:$0xff]
      %v350 = vld [vmem:[#allocation7 + $0x30] sm:$0xff]
      %v351 = vld [vmem:[#allocation7 + $0x38] sm:$0xff]
      %v352 = vld [vmem:[#allocation7 + $0x40] sm:$0xff]
      %v353 = vld [vmem:[#allocation7 + $0x48] sm:$0xff]
      %v354 = vld [vmem:[#allocation7 + $0x50] sm:$0xff]
      %v355 = vld [vmem:[#allocation7 + $0x58] sm:$0xff]
      %v356 = vld [vmem:[#allocation7 + $0x60] sm:$0xff]
      %v357 = vld [vmem:[#allocation7 + $0x68] sm:$0xff]
      %v358 = vld [vmem:[#allocation7 + $0x70] sm:$0xff]
      %v359 = vld [vmem:[#allocation7 + $0x78] sm:$0xff]
      %v360 = vld [vmem:[%s2] sm:$0x1]
      %v362 = vlaneseq
      %v363 = vshrl.u32 %v362, 7
      %v364 = vsub.s32 0, %v363
      %v365 = vrot.slane %v360, %v364
      %v367 = vadd.f32 %v344, %v365
      %v368 = vadd.f32 %v345, %v365
      %v369 = vadd.f32 %v346, %v365
      %v370 = vadd.f32 %v347, %v365
      %v371 = vadd.f32 %v348, %v365
      %v372 = vadd.f32 %v349, %v365
      %v373 = vadd.f32 %v350, %v365
      %v374 = vadd.f32 %v351, %v365
      %v375 = vadd.f32 %v352, %v365
      %v376 = vadd.f32 %v353, %v365
      %v377 = vadd.f32 %v354, %v365
      %v378 = vadd.f32 %v355, %v365
      %v379 = vadd.f32 %v356, %v365
      %v380 = vadd.f32 %v357, %v365
      %v381 = vadd.f32 %v358, %v365
      %v382 = vadd.f32 %v359, %v365
      %383 = vst [vmem:[#allocation7] sm:$0xff] %v367
      %384 = vst [vmem:[#allocation7 + $0x8] sm:$0xff] %v368
      %385 = vst [vmem:[#allocation7 + $0x10] sm:$0xff] %v369
      %386 = vst [vmem:[#allocation7 + $0x18] sm:$0xff] %v370
      %387 = vst [vmem:[#allocation7 + $0x20] sm:$0xff] %v371
      %388 = vst [vmem:[#allocation7 + $0x28] sm:$0xff] %v372
      %389 = vst [vmem:[#allocation7 + $0x30] sm:$0xff] %v373
      %390 = vst [vmem:[#allocation7 + $0x38] sm:$0xff] %v374
      %391 = vst [vmem:[#allocation7 + $0x40] sm:$0xff] %v375
      %392 = vst [vmem:[#allocation7 + $0x48] sm:$0xff] %v376
      %393 = vst [vmem:[#allocation7 + $0x50] sm:$0xff] %v377
      %394 = vst [vmem:[#allocation7 + $0x58] sm:$0xff] %v378
      %395 = vst [vmem:[#allocation7 + $0x60] sm:$0xff] %v379
      %396 = vst [vmem:[#allocation7 + $0x68] sm:$0xff] %v380
      %397 = vst [vmem:[#allocation7 + $0x70] sm:$0xff] %v381
      %398 = vst [vmem:[#allocation7 + $0x78] sm:$0xff] %v382
    $region33: #{tpu_custom_call.1} parent=1 // pred_fallthru
      _
    // Predicated region
    $region34: #{tpu_custom_call.1} parent=1 // pred_check
      _
    $region35: #{tpu_custom_call.1} parent=1 // pred_check_branch
      %400 = sbr.rel (0) target = $region37
    $region36: #{tpu_custom_call.1} parent=1 // pred_region
      %s402 = ssub.s32 2048, 2048
      %403 = vsyncadd [#allocation4], %s402
      %s404 = sshll.u32 [#allocation7], 4
      %s405 = int_to_ptr.vmem [resolvable:$true] %s404
      %410 = dma.vmem_to_hbm [thread:$0]  %s405, 2048, %s3, [#allocation4], 128, 128, 8
    $region37: #{tpu_custom_call.1} parent=1 // pred_fallthru
      _
    // Predicated region
    $region38: #{tpu_custom_call.1} parent=1 // pred_check
      _
    $region39: #{tpu_custom_call.1} parent=1 // pred_check_branch
      %412 = sbr.rel (0) target = $region41
    $region40: #{tpu_custom_call.1} parent=1 // pred_region
      %413 = dma.done [#allocation4], 2048
    $region41: #{tpu_custom_call.1} parent=1 // pred_fallthru
      _
    %414 = vsyncpa [#allocation3], 1
    %415 = vsyncpa [#allocation6], 1
    %416 = vsyncpa [#allocation4], 1

</llo_original>
